<compile_context>
chip_gen: v7x
topology: tpu7x:2x2x1
jax: 0.10.0
libtpu: 0.0.40
codegen_flags: <defaults>
</compile_context>

<pallas_src>
import jax
import jax.numpy as jnp
from jax.experimental import pallas as pl
from jax.experimental.pallas import tpu as pltpu


def dmodel_kernel(x_ref,
                  w1_ref, b1_ref,
                  w2_ref, b2_ref,
                  w3_ref, b3_ref,
                  w4_ref, b4_ref,
                  o_ref):
    """One (features, TB) batch tile of the fused 4-layer MLP.

    x_ref : (2,  TB) f32   activations, batch on the 128-lane axis
    w1_ref: (32, 2)  f32   layer-1 weight (pre-transposed: out x in)
    w2_ref: (64, 32) f32
    w3_ref: (32, 64) f32
    w4_ref: (2,  32) f32
    b*_ref: (out, 1) f32   bias columns (broadcast across lanes)
    o_ref : (2,  TB) f32
    """
    x = x_ref[...]                                          # (2, TB) f32

    # ---- Layer 1: K=2 contraction -> two VPU FMAs, keep the MXU free. ----
    h1 = (w1_ref[:, 0:1] * x[0:1, :]
          + w1_ref[:, 1:2] * x[1:2, :]
          + b1_ref[...])                                    # (32, TB) f32
    h1 = jnp.maximum(h1, 0.0)

    # ---- Layers 2-4: f32 MXU matmuls with f32 accumulation. The MXU is far
    # from saturated at K=32/64, so f32 passes cost ~nothing and we avoid the
    # bf16 casts (VPU work) and their accuracy loss. ----
    h2 = jnp.dot(w2_ref[...], h1,
                 preferred_element_type=jnp.float32) + b2_ref[...]
    h2 = jnp.maximum(h2, 0.0)                               # (64, TB) f32

    h3 = jnp.dot(w3_ref[...], h2,
                 preferred_element_type=jnp.float32) + b3_ref[...]
    h3 = jnp.maximum(h3, 0.0)                               # (32, TB) f32

    out = jnp.dot(w4_ref[...], h3,
                  preferred_element_type=jnp.float32) + b4_ref[...]

    o_ref[...] = out.astype(o_ref.dtype)                    # (2, TB)


def _round_up(n, m):
    return ((n + m - 1) // m) * m


def _pick_tile(batch, block_batch):
    """Lane-aligned batch tile, VMEM-capped, preferring >= 2 tiles (v7x 2 TCs)."""
    lanes = _round_up(max(batch, 1), 128)            # padded batch, lane aligned
    tb = _round_up(max(block_batch, 128), 128)       # defensive 128-alignment
    tb = min(tb, 16384)                              # v7x: intermediates <= ~9 MiB VMEM
    tb = min(tb, lanes)
    # If the whole (padded) batch would fit in one oversized tile, split into two
    # so the "parallel" grid axis can shard across v7x's two TensorCores.
    if lanes >= 256 and tb > lanes // 2:
        tb = max(128, ((lanes // 2) // 128) * 128)
    num_tiles = pl.cdiv(lanes, tb)
    return tb, num_tiles, num_tiles * tb


def dmodel_forward_cf(xt, params, *, block_batch=8192):
    """Channels-first entry point: xt is (2, B) f32, returns (2, B) f32.

    No transposes/pads beyond zero-padding the lane axis to the tile boundary;
    use this when the surrounding program keeps a (features, batch) layout to
    avoid wrapper-side HBM round trips entirely.
    """
    B = xt.shape[1]
    TB, num_tiles, B_pad = _pick_tile(B, block_batch)
    if B_pad != B:
        xt = jnp.pad(xt, ((0, 0), (0, B_pad - B)))

    # Pre-transposed weights (out, in) and bias columns, all f32 (MXU f32 passes).
    w1t = jnp.transpose(params["w1"])               # (32, 2)
    w2t = jnp.transpose(params["w2"])               # (64, 32)
    w3t = jnp.transpose(params["w3"])               # (32, 64)
    w4t = jnp.transpose(params["w4"])               # (2, 32)
    b1 = params["b1"].reshape(-1, 1)                # (32, 1)
    b2 = params["b2"].reshape(-1, 1)                # (64, 1)
    b3 = params["b3"].reshape(-1, 1)                # (32, 1)
    b4 = params["b4"].reshape(-1, 1)                # (2, 1)

    def tile_map(i):        # x / out: one batch tile per grid step (pipelined)
        return (0, i)

    def resident(i):        # weights / biases: same block every step -> stay in VMEM
        return (0, 0)

    in_specs = [
        pl.BlockSpec((2, TB), tile_map),
        pl.BlockSpec(w1t.shape, resident),
        pl.BlockSpec(b1.shape, resident),
        pl.BlockSpec(w2t.shape, resident),
        pl.BlockSpec(b2.shape, resident),
        pl.BlockSpec(w3t.shape, resident),
        pl.BlockSpec(b3.shape, resident),
        pl.BlockSpec(w4t.shape, resident),
        pl.BlockSpec(b4.shape, resident),
    ]
    out_spec = pl.BlockSpec((2, TB), tile_map)

    out_t = pl.pallas_call(
        dmodel_kernel,
        out_shape=jax.ShapeDtypeStruct((2, B_pad), jnp.float32),
        grid=(num_tiles,),
        in_specs=in_specs,
        out_specs=out_spec,
        compiler_params=pltpu.CompilerParams(
            # Batch tiles are independent -> shard across v7x's 2 TCs (no-op v5e/v6e).
            dimension_semantics=("parallel",),
            # 32 MiB: default on v6e/v7x, raises v5e's 16 MiB default; safely below
            # every physical limit and >3x the peak usage at TB=16384.
            vmem_limit_bytes=32 * 1024 * 1024,
        ),
    )(xt, w1t, b1, w2t, b2, w3t, b3, w4t, b4)

    return out_t[:, :B]


def dmodel_forward(x, params, *, block_batch=8192):
    """Module-compatible API: x is (B, 2) f32, returns (B, 2) f32.

    Exactly one transpose each way (pad fused by XLA into the transpose); prefer
    dmodel_forward_cf if the caller can keep a channels-first layout.
    """
    out_t = dmodel_forward_cf(jnp.transpose(x), params, block_batch=block_batch)
    return jnp.transpose(out_t)


def init_params(key):
    """Deterministic init mimicking nn.Linear default (uniform +/- 1/sqrt(fan_in)).
    Weights stored as (in_features, out_features), biases as (1, out_features)."""
    dims = [(2, 32), (32, 64), (64, 32), (32, 2)]
    params = {}
    keys = jax.random.split(key, 2 * len(dims))
    for i, (fan_in, fan_out) in enumerate(dims):
        bound = 1.0 / (fan_in ** 0.5)
        w = jax.random.uniform(keys[2 * i], (fan_in, fan_out),
                               minval=-bound, maxval=bound, dtype=jnp.float32)
        b = jax.random.uniform(keys[2 * i + 1], (1, fan_out),
                               minval=-bound, maxval=bound, dtype=jnp.float32)
        params[f"w{i + 1}"] = w
        params[f"b{i + 1}"] = b
    return params


def dmodel_reference(x, params):
    h = x
    h = jnp.maximum(h @ params["w1"] + params["b1"], 0.0)
    h = jnp.maximum(h @ params["w2"] + params["b2"], 0.0)
    h = jnp.maximum(h @ params["w3"] + params["b3"], 0.0)
    return h @ params["w4"] + params["b4"]


if __name__ == "__main__":
    key = jax.random.PRNGKey(0)
    pkey, xkey, xkey2 = jax.random.split(key, 3)

    params = init_params(pkey)

    # Small case: single padded tile through the module-compatible API.
    x = jax.random.normal(xkey, (8, 2), dtype=jnp.float32)
    out = jax.block_until_ready(dmodel_forward(x, params))
    ref = dmodel_reference(x, params)
    assert out.shape == (8, 2)
    assert jnp.allclose(out, ref, atol=1e-2, rtol=1e-2)

    # Multi-tile case: exercises the batch grid, pipelining and padding slice-off.
    x2 = jax.random.normal(xkey2, (300, 2), dtype=jnp.float32)
    out2 = jax.block_until_ready(dmodel_forward(x2, params, block_batch=128))
    ref2 = dmodel_reference(x2, params)
    assert out2.shape == (300, 2)
    assert jnp.allclose(out2, ref2, atol=1e-2, rtol=1e-2)

    # Channels-first path (no wrapper transposes at all).
    out2_cf = jax.block_until_ready(
        dmodel_forward_cf(jnp.transpose(x2), params, block_batch=256))
    assert out2_cf.shape == (2, 300)
    assert jnp.allclose(jnp.transpose(out2_cf), ref2, atol=1e-2, rtol=1e-2)

    print("KERNEL_OK")
</pallas_src>

<mosaic_0001>
module attributes {stable_mosaic.version = 11 : i64} {
  func.func @dmodel_kernel(%arg0: i32, %arg1: memref<2x128xf32, #tpu.memory_space<vmem>>, %arg2: memref<32x2xf32, #tpu.memory_space<vmem>>, %arg3: memref<32x1xf32, #tpu.memory_space<vmem>>, %arg4: memref<64x32xf32, #tpu.memory_space<vmem>>, %arg5: memref<64x1xf32, #tpu.memory_space<vmem>>, %arg6: memref<32x64xf32, #tpu.memory_space<vmem>>, %arg7: memref<32x1xf32, #tpu.memory_space<vmem>>, %arg8: memref<2x32xf32, #tpu.memory_space<vmem>>, %arg9: memref<2x1xf32, #tpu.memory_space<vmem>>, %arg10: memref<2x128xf32, #tpu.memory_space<vmem>>) attributes {dimension_semantics = [#tpu.dimension_semantics<parallel>], iteration_bounds = array<i64: 1>, scalar_prefetch = 0 : i64, scratch_operands = 0 : i64, tpu.core_type = #tpu.core_type<tc>, window_params = [{transform_indices = @transform_0, window_bounds = array<i64: 2, 128>}, {pipeline_mode = #tpu.pipeline_mode<synchronous>, transform_indices = @transform_1, window_bounds = array<i64: 32, 2>}, {pipeline_mode = #tpu.pipeline_mode<synchronous>, transform_indices = @transform_2, window_bounds = array<i64: 32, 1>}, {pipeline_mode = #tpu.pipeline_mode<synchronous>, transform_indices = @transform_3, window_bounds = array<i64: 64, 32>}, {pipeline_mode = #tpu.pipeline_mode<synchronous>, transform_indices = @transform_4, window_bounds = array<i64: 64, 1>}, {pipeline_mode = #tpu.pipeline_mode<synchronous>, transform_indices = @transform_5, window_bounds = array<i64: 32, 64>}, {pipeline_mode = #tpu.pipeline_mode<synchronous>, transform_indices = @transform_6, window_bounds = array<i64: 32, 1>}, {pipeline_mode = #tpu.pipeline_mode<synchronous>, transform_indices = @transform_7, window_bounds = array<i64: 2, 32>}, {pipeline_mode = #tpu.pipeline_mode<synchronous>, transform_indices = @transform_8, window_bounds = array<i64: 2, 1>}, {transform_indices = @transform_9, window_bounds = array<i64: 2, 128>}]} {
    %c0 = arith.constant 0 : index
    %c0_0 = arith.constant 0 : index
    %0 = vector.load %arg1[%c0, %c0_0] : memref<2x128xf32, #tpu.memory_space<vmem>>, vector<2x128xf32>
    %c0_1 = arith.constant 0 : index
    %c0_2 = arith.constant 0 : index
    %1 = vector.load %arg2[%c0_1, %c0_2] : memref<32x2xf32, #tpu.memory_space<vmem>>, vector<32x1xf32>
    %2 = vector.extract_strided_slice %0 {offsets = [0, 0], sizes = [1, 128], strides = [1, 1]} : vector<2x128xf32> to vector<1x128xf32>
    %3 = vector.broadcast %1 : vector<32x1xf32> to vector<32x128xf32>
    %4 = vector.broadcast %2 : vector<1x128xf32> to vector<32x128xf32>
    %5 = arith.mulf %3, %4 : vector<32x128xf32>
    %c0_3 = arith.constant 0 : index
    %c1 = arith.constant 1 : index
    %6 = vector.load %arg2[%c0_3, %c1] : memref<32x2xf32, #tpu.memory_space<vmem>>, vector<32x1xf32>
    %7 = vector.extract_strided_slice %0 {offsets = [1, 0], sizes = [1, 128], strides = [1, 1]} : vector<2x128xf32> to vector<1x128xf32>
    %8 = vector.broadcast %6 : vector<32x1xf32> to vector<32x128xf32>
    %9 = vector.broadcast %7 : vector<1x128xf32> to vector<32x128xf32>
    %10 = arith.mulf %8, %9 : vector<32x128xf32>
    %11 = arith.addf %5, %10 : vector<32x128xf32>
    %c0_4 = arith.constant 0 : index
    %c0_5 = arith.constant 0 : index
    %12 = vector.load %arg3[%c0_4, %c0_5] : memref<32x1xf32, #tpu.memory_space<vmem>>, vector<32x1xf32>
    %13 = vector.broadcast %12 : vector<32x1xf32> to vector<32x128xf32>
    %14 = arith.addf %11, %13 : vector<32x128xf32>
    %cst = arith.constant 0.000000e+00 : f32
    %15 = vector.broadcast %cst : f32 to vector<32x128xf32>
    %16 = arith.maximumf %14, %15 : vector<32x128xf32>
    %c0_6 = arith.constant 0 : index
    %c0_7 = arith.constant 0 : index
    %17 = vector.load %arg4[%c0_6, %c0_7] : memref<64x32xf32, #tpu.memory_space<vmem>>, vector<64x32xf32>
    %cst_8 = arith.constant dense<0.000000e+00> : vector<64x128xf32>
    %18 = tpu.matmul %17, %16, %cst_8 {dimension_numbers = #tpu.dot_dimension_numbers<[1], [0], [0], [1], [0, 0, 1, 1], [], []>} : vector<64x32xf32>, vector<32x128xf32>, vector<64x128xf32> -> vector<64x128xf32>
    %c0_9 = arith.constant 0 : index
    %c0_10 = arith.constant 0 : index
    %19 = vector.load %arg5[%c0_9, %c0_10] : memref<64x1xf32, #tpu.memory_space<vmem>>, vector<64x1xf32>
    %20 = vector.broadcast %19 : vector<64x1xf32> to vector<64x128xf32>
    %21 = arith.addf %18, %20 : vector<64x128xf32>
    %cst_11 = arith.constant 0.000000e+00 : f32
    %22 = vector.broadcast %cst_11 : f32 to vector<64x128xf32>
    %23 = arith.maximumf %21, %22 : vector<64x128xf32>
    %c0_12 = arith.constant 0 : index
    %c0_13 = arith.constant 0 : index
    %24 = vector.load %arg6[%c0_12, %c0_13] : memref<32x64xf32, #tpu.memory_space<vmem>>, vector<32x64xf32>
    %cst_14 = arith.constant dense<0.000000e+00> : vector<32x128xf32>
    %25 = tpu.matmul %24, %23, %cst_14 {dimension_numbers = #tpu.dot_dimension_numbers<[1], [0], [0], [1], [0, 0, 1, 1], [], []>} : vector<32x64xf32>, vector<64x128xf32>, vector<32x128xf32> -> vector<32x128xf32>
    %c0_15 = arith.constant 0 : index
    %c0_16 = arith.constant 0 : index
    %26 = vector.load %arg7[%c0_15, %c0_16] : memref<32x1xf32, #tpu.memory_space<vmem>>, vector<32x1xf32>
    %27 = vector.broadcast %26 : vector<32x1xf32> to vector<32x128xf32>
    %28 = arith.addf %25, %27 : vector<32x128xf32>
    %cst_17 = arith.constant 0.000000e+00 : f32
    %29 = vector.broadcast %cst_17 : f32 to vector<32x128xf32>
    %30 = arith.maximumf %28, %29 : vector<32x128xf32>
    %c0_18 = arith.constant 0 : index
    %c0_19 = arith.constant 0 : index
    %31 = vector.load %arg8[%c0_18, %c0_19] : memref<2x32xf32, #tpu.memory_space<vmem>>, vector<2x32xf32>
    %cst_20 = arith.constant dense<0.000000e+00> : vector<2x128xf32>
    %32 = tpu.matmul %31, %30, %cst_20 {dimension_numbers = #tpu.dot_dimension_numbers<[1], [0], [0], [1], [0, 0, 1, 1], [], []>} : vector<2x32xf32>, vector<32x128xf32>, vector<2x128xf32> -> vector<2x128xf32>
    %c0_21 = arith.constant 0 : index
    %c0_22 = arith.constant 0 : index
    %33 = vector.load %arg9[%c0_21, %c0_22] : memref<2x1xf32, #tpu.memory_space<vmem>>, vector<2x1xf32>
    %34 = vector.broadcast %33 : vector<2x1xf32> to vector<2x128xf32>
    %35 = arith.addf %32, %34 : vector<2x128xf32>
    %c0_23 = arith.constant 0 : index
    %c0_24 = arith.constant 0 : index
    %36 = vector.load %arg10[%c0_23, %c0_24] : memref<2x128xf32, #tpu.memory_space<vmem>>, vector<2x128xf32>
    tpu.vector_store %arg10[%c0_23, %c0_24], %35 {strides = array<i32>} : memref<2x128xf32, #tpu.memory_space<vmem>>, vector<2x128xf32>,
    return
  }
  func.func @transform_0(%arg0: i32) -> (i32, i32) {
    %c0_i32 = arith.constant 0 : i32
    %c0_i32_0 = arith.constant 0 : i32
    return %c0_i32, %arg0 : i32, i32
  }
  func.func @transform_1(%arg0: i32) -> (i32, i32) {
    %c0_i32 = arith.constant 0 : i32
    %c0_i32_0 = arith.constant 0 : i32
    %c0_i32_1 = arith.constant 0 : i32
    return %c0_i32, %c0_i32_0 : i32, i32
  }
  func.func @transform_2(%arg0: i32) -> (i32, i32) {
    %c0_i32 = arith.constant 0 : i32
    %c0_i32_0 = arith.constant 0 : i32
    %c0_i32_1 = arith.constant 0 : i32
    return %c0_i32, %c0_i32_0 : i32, i32
  }
  func.func @transform_3(%arg0: i32) -> (i32, i32) {
    %c0_i32 = arith.constant 0 : i32
    %c0_i32_0 = arith.constant 0 : i32
    %c0_i32_1 = arith.constant 0 : i32
    return %c0_i32, %c0_i32_0 : i32, i32
  }
  func.func @transform_4(%arg0: i32) -> (i32, i32) {
    %c0_i32 = arith.constant 0 : i32
    %c0_i32_0 = arith.constant 0 : i32
    %c0_i32_1 = arith.constant 0 : i32
    return %c0_i32, %c0_i32_0 : i32, i32
  }
  func.func @transform_5(%arg0: i32) -> (i32, i32) {
    %c0_i32 = arith.constant 0 : i32
    %c0_i32_0 = arith.constant 0 : i32
    %c0_i32_1 = arith.constant 0 : i32
    return %c0_i32, %c0_i32_0 : i32, i32
  }
  func.func @transform_6(%arg0: i32) -> (i32, i32) {
    %c0_i32 = arith.constant 0 : i32
    %c0_i32_0 = arith.constant 0 : i32
    %c0_i32_1 = arith.constant 0 : i32
    return %c0_i32, %c0_i32_0 : i32, i32
  }
  func.func @transform_7(%arg0: i32) -> (i32, i32) {
    %c0_i32 = arith.constant 0 : i32
    %c0_i32_0 = arith.constant 0 : i32
    %c0_i32_1 = arith.constant 0 : i32
    return %c0_i32, %c0_i32_0 : i32, i32
  }
  func.func @transform_8(%arg0: i32) -> (i32, i32) {
    %c0_i32 = arith.constant 0 : i32
    %c0_i32_0 = arith.constant 0 : i32
    %c0_i32_1 = arith.constant 0 : i32
    return %c0_i32, %c0_i32_0 : i32, i32
  }
  func.func @transform_9(%arg0: i32) -> (i32, i32) {
    %c0_i32 = arith.constant 0 : i32
    %c0_i32_0 = arith.constant 0 : i32
    return %c0_i32, %arg0 : i32, i32
  }
}

</mosaic_0001>

<llo_original>
// kernel: tpu_custom_call.1
$region0: #{tpu_custom_call.1}
  #allocation0 [shape = 'u32[]', space=smem, size = 0x4, offset = 0x4, fixed_abs, tag = 'smem constant byte address 0x4 - core index']
  #allocation1 [shape = 'u32[144,128]{1,0:T(1,128)}', space=vmem, size = 0x12000, scoped, tag = 'internal scratch']
  %s0 = inlined_call_operand.vmem [shape: f32[2,128], index: 0, kind: input, shape index: {}]
  %s1 = inlined_call_operand.vmem [shape: f32[32,2], index: 1, kind: input, shape index: {}]
  %s2 = inlined_call_operand.vmem [shape: f32[32,1], index: 2, kind: input, shape index: {}]
  %s3 = inlined_call_operand.vmem [shape: f32[64,32], index: 3, kind: input, shape index: {}]
  %s4 = inlined_call_operand.vmem [shape: f32[64,1], index: 4, kind: input, shape index: {}]
  %s5 = inlined_call_operand.vmem [shape: f32[32,64], index: 5, kind: input, shape index: {}]
  %s6 = inlined_call_operand.vmem [shape: f32[32,1], index: 6, kind: input, shape index: {}]
  %s7 = inlined_call_operand.vmem [shape: f32[2,32], index: 7, kind: input, shape index: {}]
  %s8 = inlined_call_operand.vmem [shape: f32[2,1], index: 8, kind: input, shape index: {}]
  %s9 = inlined_call_operand.hbm [shape: f32[2,128], index: 9, kind: output, shape index: {}]
  %s10 = sld [smem:[#allocation0]]
  $region46: #{tpu_custom_call.1} parent=0
    _
  %s12 = ssub.s32 1, %s10
  %s13 = scalar_select 0, %s12, %s10
  $region1: #{tpu_custom_call.1} parent=0
    #allocation2 [shape = 'u8[1024]{0}', space=vmem, size = 0x400, scoped, tag = 'output window, operand 0, single buffered']
    #allocation3 [shape = 's32[1]{0}', space=sflag, size = 0x4, scoped, tag = 'scoped memory for tpu_custom_call.1']
    %14 = vsyncpa [#allocation3], 0
    // Predicated region
    $region2: #{tpu_custom_call.1} parent=1 // pred_check
      _
    $region3: #{tpu_custom_call.1} parent=1 // pred_check_branch
      %16 = sbr.rel (0) target = $region5
    $region4: #{tpu_custom_call.1} parent=1 // pred_region
      _
    $region5: #{tpu_custom_call.1} parent=1 // pred_fallthru
      _
    // Predicated region
    $region6: #{tpu_custom_call.1} parent=1 // pred_check
      _
    $region7: #{tpu_custom_call.1} parent=1 // pred_check_branch
      %18 = sbr.rel (0) target = $region9
    $region8: #{tpu_custom_call.1} parent=1 // pred_region
      _
    $region9: #{tpu_custom_call.1} parent=1 // pred_fallthru
      _
    // Predicated region
    $region10: #{tpu_custom_call.1} parent=1 // pred_check
      _
    $region11: #{tpu_custom_call.1} parent=1 // pred_check_branch
      %20 = sbr.rel (0) target = $region13
    $region12: #{tpu_custom_call.1} parent=1 // pred_region
      _
    $region13: #{tpu_custom_call.1} parent=1 // pred_fallthru
      _
    // Predicated region
    $region14: #{tpu_custom_call.1} parent=1 // pred_check
      _
    $region15: #{tpu_custom_call.1} parent=1 // pred_check_branch
      %22 = sbr.rel (0) target = $region17
    $region16: #{tpu_custom_call.1} parent=1 // pred_region
      _
    $region17: #{tpu_custom_call.1} parent=1 // pred_fallthru
      _
    // Predicated region
    $region18: #{tpu_custom_call.1} parent=1 // pred_check
      _
    $region19: #{tpu_custom_call.1} parent=1 // pred_check_branch
      %24 = sbr.rel (0) target = $region21
    $region20: #{tpu_custom_call.1} parent=1 // pred_region
      _
    $region21: #{tpu_custom_call.1} parent=1 // pred_fallthru
      _
    // Predicated region
    $region22: #{tpu_custom_call.1} parent=1 // pred_check
      _
    $region23: #{tpu_custom_call.1} parent=1 // pred_check_branch
      %26 = sbr.rel (0) target = $region25
    $region24: #{tpu_custom_call.1} parent=1 // pred_region
      _
    $region25: #{tpu_custom_call.1} parent=1 // pred_fallthru
      _
    // Predicated region
    $region26: #{tpu_custom_call.1} parent=1 // pred_check
      _
    $region27: #{tpu_custom_call.1} parent=1 // pred_check_branch
      %28 = sbr.rel (0) target = $region29
    $region28: #{tpu_custom_call.1} parent=1 // pred_region
      _
    $region29: #{tpu_custom_call.1} parent=1 // pred_fallthru
      _
    // Predicated region
    $region30: #{tpu_custom_call.1} parent=1 // pred_check
      _
    $region31: #{tpu_custom_call.1} parent=1 // pred_check_branch
      %30 = sbr.rel (0) target = $region33
    $region32: #{tpu_custom_call.1} parent=1 // pred_region
      _
    $region33: #{tpu_custom_call.1} parent=1 // pred_fallthru
      _
    // Predicated region
    $region34: #{tpu_custom_call.1} parent=1 // pred_check
      _
    $region35: #{tpu_custom_call.1} parent=1 // pred_check_branch
      %32 = sbr.rel (0) target = $region37
    $region36: #{tpu_custom_call.1} parent=1 // pred_region
      _
    $region37: #{tpu_custom_call.1} parent=1 // pred_fallthru
      _
    %v33 = vld [vmem:[%s0] sm:$0x3]
    %v34 = vld [vmem:[%s1] sm:$0xff]
    %v35 = vld [vmem:[%s1 + $0x8] sm:$0xff]
    %v36 = vld [vmem:[%s1 + $0x10] sm:$0xff]
    %v37 = vld [vmem:[%s1 + $0x18] sm:$0xff]
    %39 = vset.pattern.permute.xlu0 0
    %40 = vperm.xlu0 %39, %v34
    %v41 = vpop.permute.xlu0 %40
    %44 = vset.pattern.permute.xlu0 0
    %45 = vperm.xlu0 %44, %v35
    %v46 = vpop.permute.xlu0 %45
    %49 = vset.pattern.permute.xlu0 0
    %50 = vperm.xlu0 %49, %v36
    %v51 = vpop.permute.xlu0 %50
    %54 = vset.pattern.permute.xlu0 0
    %55 = vperm.xlu0 %54, %v37
    %v56 = vpop.permute.xlu0 %55
    %v58 = vlaneseq
    %v59 = vshrl.u32 %v58, 7
    %v60 = vsub.s32 0, %v59
    %v61 = vrot.slane %v33, %v60
    %v62 = vmul.f32 %v41, %v61
    %v63 = vmul.f32 %v46, %v61
    %v64 = vmul.f32 %v51, %v61
    %v65 = vmul.f32 %v56, %v61
    %66 = vset.pattern.permute.xlu0 1
    %67 = vperm.xlu0 %66, %v34
    %v68 = vpop.permute.xlu0 %67
    %70 = vset.pattern.permute.xlu0 1
    %71 = vperm.xlu0 %70, %v35
    %v72 = vpop.permute.xlu0 %71
    %74 = vset.pattern.permute.xlu0 1
    %75 = vperm.xlu0 %74, %v36
    %v76 = vpop.permute.xlu0 %75
    %78 = vset.pattern.permute.xlu0 1
    %79 = vperm.xlu0 %78, %v37
    %v80 = vpop.permute.xlu0 %79
    %v82 = vlaneseq
    %v83 = vshrl.u32 %v82, 7
    %v84 = vsub.s32 1, %v83
    %v85 = vrot.slane %v33, %v84
    %v86 = vmul.f32 %v68, %v85
    %v87 = vmul.f32 %v72, %v85
    %v88 = vmul.f32 %v76, %v85
    %v89 = vmul.f32 %v80, %v85
    %v90 = vadd.f32 %v62, %v86
    %v91 = vadd.f32 %v63, %v87
    %v92 = vadd.f32 %v64, %v88
    %v93 = vadd.f32 %v65, %v89
    %v94 = vld [vmem:[%s2] sm:$0xff]
    %v95 = vld [vmem:[%s2 + $0x8] sm:$0xff]
    %v96 = vld [vmem:[%s2 + $0x10] sm:$0xff]
    %v97 = vld [vmem:[%s2 + $0x18] sm:$0xff]
    %99 = vset.pattern.permute.xlu0 0
    %100 = vperm.xlu0 %99, %v94
    %v101 = vpop.permute.xlu0 %100
    %104 = vset.pattern.permute.xlu0 0
    %105 = vperm.xlu0 %104, %v95
    %v106 = vpop.permute.xlu0 %105
    %109 = vset.pattern.permute.xlu0 0
    %110 = vperm.xlu0 %109, %v96
    %v111 = vpop.permute.xlu0 %110
    %114 = vset.pattern.permute.xlu0 0
    %115 = vperm.xlu0 %114, %v97
    %v116 = vpop.permute.xlu0 %115
    %v118 = vadd.f32 %v90, %v101
    %v119 = vadd.f32 %v91, %v106
    %v120 = vadd.f32 %v92, %v111
    %v121 = vadd.f32 %v93, %v116
    %v122 = vmax.f32 %v118, 0.0
    %v123 = vmax.f32 %v119, 0.0
    %v124 = vmax.f32 %v120, 0.0
    %v125 = vmax.f32 %v121, 0.0
    %v126 = vld [vmem:[%s3] sm:$0xff]
    %v127 = vld [vmem:[%s3 + $0x8] sm:$0xff]
    %v128 = vld [vmem:[%s3 + $0x10] sm:$0xff]
    %v129 = vld [vmem:[%s3 + $0x18] sm:$0xff]
    %v130 = vld [vmem:[%s3 + $0x20] sm:$0xff]
    %v131 = vld [vmem:[%s3 + $0x28] sm:$0xff]
    %v132 = vld [vmem:[%s3 + $0x30] sm:$0xff]
    %v133 = vld [vmem:[%s3 + $0x38] sm:$0xff]
    %v134 = vld [vmem:[%s4] sm:$0xff]
    %v135 = vld [vmem:[%s4 + $0x8] sm:$0xff]
    %v136 = vld [vmem:[%s4 + $0x10] sm:$0xff]
    %v137 = vld [vmem:[%s4 + $0x18] sm:$0xff]
    %v138 = vld [vmem:[%s4 + $0x20] sm:$0xff]
    %v139 = vld [vmem:[%s4 + $0x28] sm:$0xff]
    %v140 = vld [vmem:[%s4 + $0x30] sm:$0xff]
    %v141 = vld [vmem:[%s4 + $0x38] sm:$0xff]
    %143 = vset.pattern.permute.xlu0 0
    %144 = vperm.xlu0 %143, %v134
    %v145 = vpop.permute.xlu0 %144
    %148 = vset.pattern.permute.xlu0 0
    %149 = vperm.xlu0 %148, %v135
    %v150 = vpop.permute.xlu0 %149
    %153 = vset.pattern.permute.xlu0 0
    %154 = vperm.xlu0 %153, %v136
    %v155 = vpop.permute.xlu0 %154
    %158 = vset.pattern.permute.xlu0 0
    %159 = vperm.xlu0 %158, %v137
    %v160 = vpop.permute.xlu0 %159
    %163 = vset.pattern.permute.xlu0 0
    %164 = vperm.xlu0 %163, %v138
    %v165 = vpop.permute.xlu0 %164
    %168 = vset.pattern.permute.xlu0 0
    %169 = vperm.xlu0 %168, %v139
    %v170 = vpop.permute.xlu0 %169
    %173 = vset.pattern.permute.xlu0 0
    %174 = vperm.xlu0 %173, %v140
    %v175 = vpop.permute.xlu0 %174
    %178 = vset.pattern.permute.xlu0 0
    %179 = vperm.xlu0 %178, %v141
    %v180 = vpop.permute.xlu0 %179
    %vm182 = vcmask 261120
    %v184 = vsel %vm182, %v126, 0
    %v187 = vsel %vm182, %v127, 0
    %v190 = vsel %vm182, %v128, 0
    %v193 = vsel %vm182, %v129, 0
    %v196 = vsel %vm182, %v130, 0
    %v199 = vsel %vm182, %v131, 0
    %v202 = vsel %vm182, %v132, 0
    %v205 = vsel %vm182, %v133, 0
    %207 = vmatprep.subr.mxu0 0.0
    %208 = vmatpush1.msra.mxu0 %v122
    %209 = vmatprep.subr.mxu0 0.0
    %210 = vmatpush1.msra.mxu0 %v123
    %211 = vmatprep.subr.mxu0 0.0
    %212 = vmatpush1.msra.mxu0 %v124
    %213 = vmatprep.subr.mxu0 0.0
    %214 = vmatpush1.msra.mxu0 %v125
    %215 = vmatprep.subr.mxu0 0.0
    %216 = vmatpush1.msra.mxu0 0.0
    %217 = vmatprep.subr.mxu0 0.0
    %218 = vmatpush1.msra.mxu0 0.0
    %219 = vmatprep.subr.mxu0 0.0
    %220 = vmatpush1.msra.mxu0 0.0
    %221 = vmatprep.subr.mxu0 0.0
    %222 = vmatpush1.msra.mxu0 0.0
    %223 = vmatprep.subr.mxu0 0.0
    %224 = vmatpush1.msra.mxu0 0.0
    %225 = vmatprep.subr.mxu0 0.0
    %226 = vmatpush1.msra.mxu0 0.0
    %227 = vmatprep.subr.mxu0 0.0
    %228 = vmatpush1.msra.mxu0 0.0
    %229 = vmatprep.subr.mxu0 0.0
    %230 = vmatpush1.msra.mxu0 0.0
    %231 = vmatprep.subr.mxu0 0.0
    %232 = vmatpush1.msra.mxu0 0.0
    %233 = vmatprep.subr.mxu0 0.0
    %234 = vmatpush1.msra.mxu0 0.0
    %235 = vmatprep.subr.mxu0 0.0
    %236 = vmatpush1.msra.mxu0 0.0
    %237 = vmatprep.subr.mxu0 0.0
    %238 = vmatpush1.msra.mxu0 0.0
    %239 = vmatprep.subr.mxu0 0.0
    %240 = vmatpush1.msra.mxu0 0.0
    %241 = vmatprep.subr.mxu0 0.0
    %242 = vmatpush1.msra.mxu0 0.0
    %243 = vmatprep.subr.mxu0 0.0
    %244 = vmatpush1.msra.mxu0 0.0
    %245 = vmatprep.subr.mxu0 0.0
    %246 = vmatpush1.msra.mxu0 0.0
    %247 = vmatprep.subr.mxu0 0.0
    %248 = vmatpush1.msra.mxu0 0.0
    %249 = vmatprep.subr.mxu0 0.0
    %250 = vmatpush1.msra.mxu0 0.0
    %251 = vmatprep.subr.mxu0 0.0
    %252 = vmatpush1.msra.mxu0 0.0
    %253 = vmatprep.subr.mxu0 0.0
    %254 = vmatpush1.msra.mxu0 0.0
    %255 = vmatprep.subr.mxu0 0.0
    %256 = vmatpush1.msra.mxu0 0.0
    %257 = vmatprep.subr.mxu0 0.0
    %258 = vmatpush1.msra.mxu0 0.0
    %259 = vmatprep.subr.mxu0 0.0
    %260 = vmatpush1.msra.mxu0 0.0
    %261 = vmatprep.subr.mxu0 0.0
    %262 = vmatpush1.msra.mxu0 0.0
    %263 = vmatprep.subr.mxu0 0.0
    %264 = vmatpush1.msra.mxu0 0.0
    %265 = vmatprep.subr.mxu0 0.0
    %266 = vmatpush1.msra.mxu0 0.0
    %267 = vmatprep.subr.mxu0 0.0
    %268 = vmatpush1.msra.mxu0 0.0
    %269 = vmatprep.subr.mxu0 0.0
    %270 = vmatpush1.msra.mxu0 0.0
    %271 = vmatprep.mubr.f32.mxu0 0.0
    %272 = vmatmul.mubr.f32.gmra.mrb[0].mxu0 %v184
    %v273 = vpop.f32.mrb[0].mxu0
    %v274 = vadd.f32 %v145, %v273
    %v275 = vpop.f32.mrb[0].mxu0
    %276 = vmatprep.mubr.f32.mxu0 0.0
    %277 = vmatmul.mubr.f32.gmra.mrb[0].mxu0 %v187
    %v278 = vpop.f32.mrb[0].mxu0
    %v279 = vadd.f32 %v150, %v278
    %v280 = vpop.f32.mrb[0].mxu0
    %281 = vmatprep.mubr.f32.mxu0 0.0
    %282 = vmatmul.mubr.f32.gmra.mrb[0].mxu0 %v190
    %v283 = vpop.f32.mrb[0].mxu0
    %v284 = vadd.f32 %v155, %v283
    %v285 = vpop.f32.mrb[0].mxu0
    %286 = vmatprep.mubr.f32.mxu0 0.0
    %287 = vmatmul.mubr.f32.gmra.mrb[0].mxu0 %v193
    %v288 = vpop.f32.mrb[0].mxu0
    %v289 = vadd.f32 %v160, %v288
    %v290 = vpop.f32.mrb[0].mxu0
    %291 = vmatprep.mubr.f32.mxu0 0.0
    %292 = vmatmul.mubr.f32.gmra.mrb[0].mxu0 %v196
    %v293 = vpop.f32.mrb[0].mxu0
    %v294 = vadd.f32 %v165, %v293
    %v295 = vpop.f32.mrb[0].mxu0
    %296 = vmatprep.mubr.f32.mxu0 0.0
    %297 = vmatmul.mubr.f32.gmra.mrb[0].mxu0 %v199
    %v298 = vpop.f32.mrb[0].mxu0
    %v299 = vadd.f32 %v170, %v298
    %v300 = vpop.f32.mrb[0].mxu0
    %301 = vmatprep.mubr.f32.mxu0 0.0
    %302 = vmatmul.mubr.f32.gmra.mrb[0].mxu0 %v202
    %v303 = vpop.f32.mrb[0].mxu0
    %v304 = vadd.f32 %v175, %v303
    %v305 = vpop.f32.mrb[0].mxu0
    %306 = vmatprep.mubr.f32.mxu0 0.0
    %307 = vmatmul.mubr.f32.gmra.mrb[0].mxu0 %v205
    %v308 = vpop.f32.mrb[0].mxu0
    %v309 = vadd.f32 %v180, %v308
    %v310 = vpop.f32.mrb[0].mxu0
    %311 = vdwg.mxu0
    %v312 = vmax.f32 %v274, 0.0
    %v313 = vmax.f32 %v279, 0.0
    %v314 = vmax.f32 %v284, 0.0
    %v315 = vmax.f32 %v289, 0.0
    %v316 = vmax.f32 %v294, 0.0
    %v317 = vmax.f32 %v299, 0.0
    %v318 = vmax.f32 %v304, 0.0
    %v319 = vmax.f32 %v309, 0.0
    %v320 = vld [vmem:[%s5] sm:$0xff]
    %v321 = vld [vmem:[%s5 + $0x8] sm:$0xff]
    %v322 = vld [vmem:[%s5 + $0x10] sm:$0xff]
    %v323 = vld [vmem:[%s5 + $0x18] sm:$0xff]
    %v324 = vld [vmem:[%s6] sm:$0xff]
    %v325 = vld [vmem:[%s6 + $0x8] sm:$0xff]
    %v326 = vld [vmem:[%s6 + $0x10] sm:$0xff]
    %v327 = vld [vmem:[%s6 + $0x18] sm:$0xff]
    %329 = vset.pattern.permute.xlu0 0
    %330 = vperm.xlu0 %329, %v324
    %v331 = vpop.permute.xlu0 %330
    %334 = vset.pattern.permute.xlu0 0
    %335 = vperm.xlu0 %334, %v325
    %v336 = vpop.permute.xlu0 %335
    %339 = vset.pattern.permute.xlu0 0
    %340 = vperm.xlu0 %339, %v326
    %v341 = vpop.permute.xlu0 %340
    %344 = vset.pattern.permute.xlu0 0
    %345 = vperm.xlu0 %344, %v327
    %v346 = vpop.permute.xlu0 %345
    %vm348 = vcmask 523264
    %v350 = vsel %vm348, %v320, 0
    %v353 = vsel %vm348, %v321, 0
    %v356 = vsel %vm348, %v322, 0
    %v359 = vsel %vm348, %v323, 0
    %361 = vmatprep.subr.mxu0 0.0
    %362 = vmatpush1.msra.mxu0 %v312
    %363 = vmatprep.subr.mxu0 0.0
    %364 = vmatpush1.msra.mxu0 %v313
    %365 = vmatprep.subr.mxu0 0.0
    %366 = vmatpush1.msra.mxu0 %v314
    %367 = vmatprep.subr.mxu0 0.0
    %368 = vmatpush1.msra.mxu0 %v315
    %369 = vmatprep.subr.mxu0 0.0
    %370 = vmatpush1.msra.mxu0 %v316
    %371 = vmatprep.subr.mxu0 0.0
    %372 = vmatpush1.msra.mxu0 %v317
    %373 = vmatprep.subr.mxu0 0.0
    %374 = vmatpush1.msra.mxu0 %v318
    %375 = vmatprep.subr.mxu0 0.0
    %376 = vmatpush1.msra.mxu0 %v319
    %377 = vmatprep.subr.mxu0 0.0
    %378 = vmatpush1.msra.mxu0 0.0
    %379 = vmatprep.subr.mxu0 0.0
    %380 = vmatpush1.msra.mxu0 0.0
    %381 = vmatprep.subr.mxu0 0.0
    %382 = vmatpush1.msra.mxu0 0.0
    %383 = vmatprep.subr.mxu0 0.0
    %384 = vmatpush1.msra.mxu0 0.0
    %385 = vmatprep.subr.mxu0 0.0
    %386 = vmatpush1.msra.mxu0 0.0
    %387 = vmatprep.subr.mxu0 0.0
    %388 = vmatpush1.msra.mxu0 0.0
    %389 = vmatprep.subr.mxu0 0.0
    %390 = vmatpush1.msra.mxu0 0.0
    %391 = vmatprep.subr.mxu0 0.0
    %392 = vmatpush1.msra.mxu0 0.0
    %393 = vmatprep.subr.mxu0 0.0
    %394 = vmatpush1.msra.mxu0 0.0
    %395 = vmatprep.subr.mxu0 0.0
    %396 = vmatpush1.msra.mxu0 0.0
    %397 = vmatprep.subr.mxu0 0.0
    %398 = vmatpush1.msra.mxu0 0.0
    %399 = vmatprep.subr.mxu0 0.0
    %400 = vmatpush1.msra.mxu0 0.0
    %401 = vmatprep.subr.mxu0 0.0
    %402 = vmatpush1.msra.mxu0 0.0
    %403 = vmatprep.subr.mxu0 0.0
    %404 = vmatpush1.msra.mxu0 0.0
    %405 = vmatprep.subr.mxu0 0.0
    %406 = vmatpush1.msra.mxu0 0.0
    %407 = vmatprep.subr.mxu0 0.0
    %408 = vmatpush1.msra.mxu0 0.0
    %409 = vmatprep.subr.mxu0 0.0
    %410 = vmatpush1.msra.mxu0 0.0
    %411 = vmatprep.subr.mxu0 0.0
    %412 = vmatpush1.msra.mxu0 0.0
    %413 = vmatprep.subr.mxu0 0.0
    %414 = vmatpush1.msra.mxu0 0.0
    %415 = vmatprep.subr.mxu0 0.0
    %416 = vmatpush1.msra.mxu0 0.0
    %417 = vmatprep.subr.mxu0 0.0
    %418 = vmatpush1.msra.mxu0 0.0
    %419 = vmatprep.subr.mxu0 0.0
    %420 = vmatpush1.msra.mxu0 0.0
    %421 = vmatprep.subr.mxu0 0.0
    %422 = vmatpush1.msra.mxu0 0.0
    %423 = vmatprep.subr.mxu0 0.0
    %424 = vmatpush1.msra.mxu0 0.0
    %425 = vmatprep.mubr.f32.mxu0 0.0
    %426 = vmatmul.mubr.f32.gmra.mrb[0].mxu0 %v350
    %v427 = vpop.f32.mrb[0].mxu0
    %v428 = vadd.f32 %v331, %v427
    %v429 = vpop.f32.mrb[0].mxu0
    %430 = vmatprep.mubr.f32.mxu0 0.0
    %431 = vmatmul.mubr.f32.gmra.mrb[0].mxu0 %v353
    %v432 = vpop.f32.mrb[0].mxu0
    %v433 = vadd.f32 %v336, %v432
    %v434 = vpop.f32.mrb[0].mxu0
    %435 = vmatprep.mubr.f32.mxu0 0.0
    %436 = vmatmul.mubr.f32.gmra.mrb[0].mxu0 %v356
    %v437 = vpop.f32.mrb[0].mxu0
    %v438 = vadd.f32 %v341, %v437
    %v439 = vpop.f32.mrb[0].mxu0
    %440 = vmatprep.mubr.f32.mxu0 0.0
    %441 = vmatmul.mubr.f32.gmra.mrb[0].mxu0 %v359
    %v442 = vpop.f32.mrb[0].mxu0
    %v443 = vadd.f32 %v346, %v442
    %v444 = vpop.f32.mrb[0].mxu0
    %445 = vdwg.mxu0
    %v446 = vmax.f32 %v428, 0.0
    %v447 = vmax.f32 %v433, 0.0
    %v448 = vmax.f32 %v438, 0.0
    %v449 = vmax.f32 %v443, 0.0
    %v450 = vld [vmem:[%s7] sm:$0x3]
    %v451 = vld [vmem:[%s8] sm:$0x3]
    %453 = vset.pattern.permute.xlu0 0
    %454 = vperm.xlu0 %453, %v451
    %v455 = vpop.permute.xlu0 %454
    %v458 = vsel %vm182, %v450, 0
    %460 = vmatprep.subr.mxu0 0.0
    %461 = vmatpush1.msra.mxu0 %v446
    %462 = vmatprep.subr.mxu0 0.0
    %463 = vmatpush1.msra.mxu0 %v447
    %464 = vmatprep.subr.mxu0 0.0
    %465 = vmatpush1.msra.mxu0 %v448
    %466 = vmatprep.subr.mxu0 0.0
    %467 = vmatpush1.msra.mxu0 %v449
    %468 = vmatprep.subr.mxu0 0.0
    %469 = vmatpush1.msra.mxu0 0.0
    %470 = vmatprep.subr.mxu0 0.0
    %471 = vmatpush1.msra.mxu0 0.0
    %472 = vmatprep.subr.mxu0 0.0
    %473 = vmatpush1.msra.mxu0 0.0
    %474 = vmatprep.subr.mxu0 0.0
    %475 = vmatpush1.msra.mxu0 0.0
    %476 = vmatprep.subr.mxu0 0.0
    %477 = vmatpush1.msra.mxu0 0.0
    %478 = vmatprep.subr.mxu0 0.0
    %479 = vmatpush1.msra.mxu0 0.0
    %480 = vmatprep.subr.mxu0 0.0
    %481 = vmatpush1.msra.mxu0 0.0
    %482 = vmatprep.subr.mxu0 0.0
    %483 = vmatpush1.msra.mxu0 0.0
    %484 = vmatprep.subr.mxu0 0.0
    %485 = vmatpush1.msra.mxu0 0.0
    %486 = vmatprep.subr.mxu0 0.0
    %487 = vmatpush1.msra.mxu0 0.0
    %488 = vmatprep.subr.mxu0 0.0
    %489 = vmatpush1.msra.mxu0 0.0
    %490 = vmatprep.subr.mxu0 0.0
    %491 = vmatpush1.msra.mxu0 0.0
    %492 = vmatprep.subr.mxu0 0.0
    %493 = vmatpush1.msra.mxu0 0.0
    %494 = vmatprep.subr.mxu0 0.0
    %495 = vmatpush1.msra.mxu0 0.0
    %496 = vmatprep.subr.mxu0 0.0
    %497 = vmatpush1.msra.mxu0 0.0
    %498 = vmatprep.subr.mxu0 0.0
    %499 = vmatpush1.msra.mxu0 0.0
    %500 = vmatprep.subr.mxu0 0.0
    %501 = vmatpush1.msra.mxu0 0.0
    %502 = vmatprep.subr.mxu0 0.0
    %503 = vmatpush1.msra.mxu0 0.0
    %504 = vmatprep.subr.mxu0 0.0
    %505 = vmatpush1.msra.mxu0 0.0
    %506 = vmatprep.subr.mxu0 0.0
    %507 = vmatpush1.msra.mxu0 0.0
    %508 = vmatprep.subr.mxu0 0.0
    %509 = vmatpush1.msra.mxu0 0.0
    %510 = vmatprep.subr.mxu0 0.0
    %511 = vmatpush1.msra.mxu0 0.0
    %512 = vmatprep.subr.mxu0 0.0
    %513 = vmatpush1.msra.mxu0 0.0
    %514 = vmatprep.subr.mxu0 0.0
    %515 = vmatpush1.msra.mxu0 0.0
    %516 = vmatprep.subr.mxu0 0.0
    %517 = vmatpush1.msra.mxu0 0.0
    %518 = vmatprep.subr.mxu0 0.0
    %519 = vmatpush1.msra.mxu0 0.0
    %520 = vmatprep.subr.mxu0 0.0
    %521 = vmatpush1.msra.mxu0 0.0
    %522 = vmatprep.subr.mxu0 0.0
    %523 = vmatpush1.msra.mxu0 0.0
    %524 = vmatprep.mubr.f32.mxu0 0.0
    %525 = vmatmul.mubr.f32.gmra.mrb[0].mxu0 %v458
    %v526 = vpop.f32.mrb[0].mxu0
    %v527 = vadd.f32 %v455, %v526
    %v528 = vpop.f32.mrb[0].mxu0
    %529 = vdwg.mxu0
    %530 = vst [vmem:[#allocation2] sm:$0x3] %v527
    // Predicated region
    $region38: #{tpu_custom_call.1} parent=1 // pred_check
      _
    $region39: #{tpu_custom_call.1} parent=1 // pred_check_branch
      %532 = sbr.rel (0) target = $region41
    $region40: #{tpu_custom_call.1} parent=1 // pred_region
      %s534 = ssub.s32 32, 32
      %535 = vsyncadd [#allocation3], %s534
      %s537 = sshll.u32 [#allocation2], 4
      %s538 = int_to_ptr.vmem [resolvable:$true] %s537
      %540 = dma.vmem_to_hbm [thread:$0]  %s538, 32, %s9, [#allocation3]
    $region41: #{tpu_custom_call.1} parent=1 // pred_fallthru
      _
    // Predicated region
    $region42: #{tpu_custom_call.1} parent=1 // pred_check
      _
    $region43: #{tpu_custom_call.1} parent=1 // pred_check_branch
      %542 = sbr.rel (0) target = $region45
    $region44: #{tpu_custom_call.1} parent=1 // pred_region
      %543 = dma.done [#allocation3], 32
    $region45: #{tpu_custom_call.1} parent=1 // pred_fallthru
      _
    %544 = vsyncpa [#allocation3], 1

</llo_original>
